<compile_context>
chip_gen: v7x
topology: tpu7x:2x2x1
jax: 0.10.0
libtpu: 0.0.40
codegen_flags: <defaults>
</compile_context>

<pallas_src>
import functools

import jax
import jax.numpy as jnp
from jax.experimental import pallas as pl
from jax.experimental.pallas import tpu as pltpu

KH = 9          # conv kernel height
PAD = 4         # conv padding along H
NEG_SLOPE = 0.3
POOL = 4        # max-pool along H when downsample=True
BN_EPS = 1e-5


def _conv_bn_lrelu_pool_kernel(x_ref, w_ref, scale_ref, bias_ref, o_ref,
                               patches_ref,
                               *, H, W, C_in, C_out, B_tile, downsample):
    """One grid step processes B_tile images.

    x_ref:       (B_tile*C_in, H*W)         NCHW input, batch+channel folded on
                                            the sublane axis, spatial on lanes
    w_ref:       (C_out, KH*C_in)           packed conv weights, col = k*C_in+ci
    scale_ref:   (C_out, 1)                 folded BN scale (gamma/sqrt(var+eps))
    bias_ref:    (C_out, 1)                 folded BN bias  (beta - mean*scale)
    o_ref:       (B_tile*C_out, H_out*W)    H_out = H//POOL if downsample else H
    patches_ref: (KH*C_in, B_tile*H*W)      im2col scratch (VMEM)
    """
    HW = H * W
    H_out = H // POOL if downsample else H

    # Hoisted helpers shared by all taps / batch images.
    col = jax.lax.broadcasted_iota(jnp.int32, (C_in, HW), 1)
    zero_blk = jnp.zeros((C_in, HW), x_ref.dtype)
    tap_mask = []
    for k in range(KH):
        d = k - PAD
        if d == 0:
            tap_mask.append(None)
        elif d > 0:
            # output row h valid iff h + d < H  ->  column < (H - d) * W
            tap_mask.append(col < (H - d) * W)
        else:
            # output row h valid iff h + d >= 0 ->  column >= (-d) * W
            tap_mask.append(col >= (-d) * W)

    # ---- im2col with padding=(4,0) realized via roll + mask.  Every store is
    # a full-width lane-dense write, so the scratch never needs a memset and
    # the (only) vst slot sees no masked partial stores.
    # patches[k*C_in + ci, b*HW + h*W + w] = x[b, ci, h + k - PAD, w] (0 outside)
    for b in range(B_tile):            # small static unroll (B_tile is tiny)
        xb = x_ref[b * C_in:(b + 1) * C_in, :]            # (C_in, HW)
        base = b * HW
        for k in range(KH):                               # 9 taps, static unroll
            d = k - PAD
            r0 = k * C_in
            if d == 0:
                blk = xb
            else:
                shift = (-d * W) % HW                     # jnp.roll semantics
                shifted = pltpu.roll(xb, shift, axis=1)   # XLU lane rotate
                blk = jnp.where(tap_mask[k], shifted, zero_blk)
            patches_ref[r0:r0 + C_in, base:base + HW] = blk

    # ---- fused conv: ONE MXU matmul.  M=C_out, K=KH*C_in, N=B_tile*H*W
    # (lane dense), f32 accumulation.
    acc = jnp.dot(w_ref[...], patches_ref[...],
                  preferred_element_type=jnp.float32)     # (C_out, B_tile*HW)

    # ---- folded BatchNorm (eval) + LeakyReLU(0.3); epilogue stays f32.
    y = acc * scale_ref[...] + bias_ref[...]
    y = jnp.maximum(y, NEG_SLOPE * y)                     # exact leaky relu

    # ---- optional MaxPool2d((4,1),(4,1)): roll-based max tree (XLU/VPU) +
    # one compacting slice per image.  For kept columns (h % POOL == 0) all
    # POOL contributions lie inside the same image, so the wrap-around of the
    # full-width rolls across image boundaries never reaches a kept column.
    if downsample:
        total = B_tile * HW
        p1 = pltpu.roll(y, (total - W) % total, axis=1)
        p2 = pltpu.roll(y, (total - 2 * W) % total, axis=1)
        p3 = pltpu.roll(y, (total - 3 * W) % total, axis=1)
        y = jnp.maximum(jnp.maximum(y, p1), jnp.maximum(p2, p3))

    for b in range(B_tile):
        yb = y[:, b * HW:(b + 1) * HW]                    # (C_out, HW)
        if downsample:
            # keep the first W lanes of every POOL*W block (rows h % POOL == 0)
            yb = yb.reshape(C_out, H // POOL, POOL * W)[:, :, :W]
            yb = yb.reshape(C_out, H_out * W)
        o_ref[b * C_out:(b + 1) * C_out, :] = yb.astype(o_ref.dtype)

    # TODO(synk): Dropout(0.5) is treated as identity (eval-mode forward);
    # training-mode random masking is intentionally not emulated.


def other_conv_block(x_nchw, conv_w, gamma, beta, run_mean, run_var,
                     *, downsample, compute_dtype=jnp.bfloat16):
    """Forward pass of OtherConvBlock (eval mode). x_nchw: (N, C_in, H, W)."""
    N, C_in, H, W = x_nchw.shape
    C_out = conv_w.shape[0]
    assert conv_w.shape == (C_out, C_in, KH, 1)
    if downsample:
        assert H % POOL == 0
    H_out = H // POOL if downsample else H
    HW = H * W
    HoW = H_out * W
    itemsize = jnp.dtype(compute_dtype).itemsize

    # ---- B_tile from a VMEM byte budget (9x im2col scratch dominates).
    # Budget kept well under v7x's 64 MiB per-TC VMEM; prefer sublane-aligned
    # folded input blocks and (when possible) grid >= 2 so v7x megacore can
    # shard the batch axis across both TensorCores.
    budget = 20 * 1024 * 1024

    def _footprint(c):
        return (2 * c * C_in * HW * itemsize        # x tile, double-buffered
                + 2 * c * C_out * HoW * 4           # out tile, double-buffered
                + KH * C_in * c * HW * itemsize     # im2col scratch
                + 2 * C_out * c * HW * 4)           # acc / y f32 temps

    divisors = [c for c in range(N, 0, -1) if N % c == 0]
    fitting = [c for c in divisors if _footprint(c) <= budget] or [1]

    def _rank(c):
        aligned = ((c * C_in) % 8 == 0) or (c == N)   # sublane-clean input block
        multi_step = (N // c) >= 2 or N == 1          # >=2 grid steps (v7x)
        return (aligned, multi_step, c)

    B_tile = max(fitting, key=_rank)
    vmem_limit = int(min(64 * 1024 * 1024,
                         max(32 * 1024 * 1024, 2 * _footprint(B_tile))))

    # NCHW with batch+channel folded onto sublanes and spatial flattened onto
    # lanes (metadata-only reshape; no transpose, no pad in the wrapper).
    x2 = x_nchw.reshape(N * C_in, HW).astype(compute_dtype)

    # Pack conv weight (C_out, C_in, KH, 1) -> (C_out, KH*C_in), col = k*C_in+ci.
    w = jnp.transpose(conv_w[..., 0], (0, 2, 1)).reshape(C_out, KH * C_in)
    w = w.astype(compute_dtype)

    # Fold BatchNorm2d (eval / running stats) into per-channel scale & bias (f32).
    scale1 = (gamma.astype(jnp.float32)
              / jnp.sqrt(run_var.astype(jnp.float32) + BN_EPS))
    bias1 = beta.astype(jnp.float32) - run_mean.astype(jnp.float32) * scale1
    scale = scale1.reshape(C_out, 1)
    bias = bias1.reshape(C_out, 1)

    kernel = functools.partial(_conv_bn_lrelu_pool_kernel,
                               H=H, W=W, C_in=C_in, C_out=C_out,
                               B_tile=B_tile, downsample=downsample)

    out = pl.pallas_call(
        kernel,
        out_shape=jax.ShapeDtypeStruct((N * C_out, HoW), jnp.float32),
        grid_spec=pltpu.PrefetchScalarGridSpec(
            num_scalar_prefetch=0,
            grid=(N // B_tile,),
            in_specs=[
                pl.BlockSpec((B_tile * C_in, HW), lambda n: (n, 0)),
                pl.BlockSpec((C_out, KH * C_in), lambda n: (0, 0)),
                pl.BlockSpec((C_out, 1), lambda n: (0, 0)),
                pl.BlockSpec((C_out, 1), lambda n: (0, 0)),
            ],
            out_specs=pl.BlockSpec((B_tile * C_out, HoW), lambda n: (n, 0)),
            scratch_shapes=[pltpu.VMEM((KH * C_in, B_tile * HW), compute_dtype)],
        ),
        compiler_params=pltpu.CompilerParams(
            dimension_semantics=("parallel",),     # batch axis is independent
            vmem_limit_bytes=vmem_limit),
    )(x2, w, scale, bias)

    # (N*C_out, H_out*W) -> NCHW is a metadata-only reshape.
    return out.reshape(N, C_out, H_out, W)


def _reference_forward(x_nchw, conv_w, gamma, beta, run_mean, run_var,
                       *, downsample):
    """Pure-JAX reference (same eval-mode semantics) for correctness check."""
    y = jax.lax.conv_general_dilated(
        x_nchw.astype(jnp.float32), conv_w.astype(jnp.float32),
        window_strides=(1, 1), padding=((PAD, PAD), (0, 0)),
        dimension_numbers=("NCHW", "OIHW", "NCHW"))
    scale = gamma / jnp.sqrt(run_var + BN_EPS)
    bias = beta - run_mean * scale
    y = y * scale[None, :, None, None] + bias[None, :, None, None]
    y = jnp.where(y >= 0, y, NEG_SLOPE * y)
    if downsample:
        N, C, H, W = y.shape
        y = y.reshape(N, C, H // POOL, POOL, W).max(axis=3)
    return y


if __name__ == "__main__":
    # Small shapes consistent with the module: NCHW input, conv over H.
    N, C_in, C_out, H, W = 2, 4, 8, 16, 16

    key = jax.random.PRNGKey(0)
    kx, kw, kg, kb, km, kv = jax.random.split(key, 6)

    x = jax.random.normal(kx, (N, C_in, H, W), jnp.float32)
    # Conv2d(in, out, kernel_size=(9,1), bias=False) weight: (C_out, C_in, 9, 1)
    conv_w = 0.1 * jax.random.normal(kw, (C_out, C_in, KH, 1), jnp.float32)
    # BatchNorm2d(out_channels) parameters / running stats (deterministic).
    gamma = jax.random.uniform(kg, (C_out,), jnp.float32, 0.5, 1.5)
    beta = 0.1 * jax.random.normal(kb, (C_out,), jnp.float32)
    run_mean = 0.1 * jax.random.normal(km, (C_out,), jnp.float32)
    run_var = jax.random.uniform(kv, (C_out,), jnp.float32, 0.5, 1.5)

    # f32 path (exact semantics), both downsample settings.
    for downsample in (True, False):
        out = other_conv_block(x, conv_w, gamma, beta, run_mean, run_var,
                               downsample=downsample,
                               compute_dtype=jnp.float32)
        out = jax.block_until_ready(out)
        ref = _reference_forward(x, conv_w, gamma, beta, run_mean, run_var,
                                 downsample=downsample)
        h_out = H // POOL if downsample else H
        assert out.shape == (N, C_out, h_out, W), out.shape
        assert jnp.allclose(out, ref, atol=1e-4, rtol=1e-4), (
            f"mismatch (downsample={downsample}): "
            f"{jnp.max(jnp.abs(out - ref))}")

    # bf16 activation/weight default path: f32 accumulation + f32 epilogue.
    out_bf16 = other_conv_block(x, conv_w, gamma, beta, run_mean, run_var,
                                downsample=True)
    out_bf16 = jax.block_until_ready(out_bf16)
    ref_ds = _reference_forward(x, conv_w, gamma, beta, run_mean, run_var,
                                downsample=True)
    assert out_bf16.shape == (N, C_out, H // POOL, W), out_bf16.shape
    assert jnp.allclose(out_bf16, ref_ds, atol=5e-2, rtol=5e-2), (
        f"bf16 mismatch: {jnp.max(jnp.abs(out_bf16 - ref_ds))}")

    print("KERNEL_OK")
</pallas_src>

<mosaic_0001>
module attributes {stable_mosaic.version = 11 : i64} {
  func.func @_conv_bn_lrelu_pool_kernel(%arg0: i32, %arg1: memref<8x256xf32, #tpu.memory_space<vmem>>, %arg2: memref<8x36xf32, #tpu.memory_space<vmem>>, %arg3: memref<8x1xf32, #tpu.memory_space<vmem>>, %arg4: memref<8x1xf32, #tpu.memory_space<vmem>>, %arg5: memref<16x64xf32, #tpu.memory_space<vmem>>, %arg6: memref<36x512xf32, #tpu.memory_space<vmem>>) attributes {dimension_semantics = [#tpu.dimension_semantics<parallel>], iteration_bounds = array<i64: 1>, scalar_prefetch = 0 : i64, scratch_operands = 1 : i64, tpu.core_type = #tpu.core_type<tc>, window_params = [{transform_indices = @transform_0, window_bounds = array<i64: 8, 256>}, {pipeline_mode = #tpu.pipeline_mode<synchronous>, transform_indices = @transform_1, window_bounds = array<i64: 8, 36>}, {pipeline_mode = #tpu.pipeline_mode<synchronous>, transform_indices = @transform_2, window_bounds = array<i64: 8, 1>}, {pipeline_mode = #tpu.pipeline_mode<synchronous>, transform_indices = @transform_3, window_bounds = array<i64: 8, 1>}, {transform_indices = @transform_4, window_bounds = array<i64: 16, 64>}]} {
    %0 = tpu.iota {dimensions = array<i32: 1>} : vector<4x256xi32>
    %cst = arith.constant 0.000000e+00 : f32
    %1 = vector.broadcast %cst : f32 to vector<4x256xf32>
    %c64_i32 = arith.constant 64 : i32
    %2 = vector.broadcast %c64_i32 : i32 to vector<4x256xi32>
    %3 = arith.cmpi sge, %0, %2 : vector<4x256xi32>
    %c48_i32 = arith.constant 48 : i32
    %4 = vector.broadcast %c48_i32 : i32 to vector<4x256xi32>
    %5 = arith.cmpi sge, %0, %4 : vector<4x256xi32>
    %c32_i32 = arith.constant 32 : i32
    %6 = vector.broadcast %c32_i32 : i32 to vector<4x256xi32>
    %7 = arith.cmpi sge, %0, %6 : vector<4x256xi32>
    %c16_i32 = arith.constant 16 : i32
    %8 = vector.broadcast %c16_i32 : i32 to vector<4x256xi32>
    %9 = arith.cmpi sge, %0, %8 : vector<4x256xi32>
    %c240_i32 = arith.constant 240 : i32
    %10 = vector.broadcast %c240_i32 : i32 to vector<4x256xi32>
    %11 = arith.cmpi slt, %0, %10 : vector<4x256xi32>
    %c224_i32 = arith.constant 224 : i32
    %12 = vector.broadcast %c224_i32 : i32 to vector<4x256xi32>
    %13 = arith.cmpi slt, %0, %12 : vector<4x256xi32>
    %c208_i32 = arith.constant 208 : i32
    %14 = vector.broadcast %c208_i32 : i32 to vector<4x256xi32>
    %15 = arith.cmpi slt, %0, %14 : vector<4x256xi32>
    %c192_i32 = arith.constant 192 : i32
    %16 = vector.broadcast %c192_i32 : i32 to vector<4x256xi32>
    %17 = arith.cmpi slt, %0, %16 : vector<4x256xi32>
    %c0 = arith.constant 0 : index
    %c0_0 = arith.constant 0 : index
    %18 = vector.load %arg1[%c0, %c0_0] : memref<8x256xf32, #tpu.memory_space<vmem>>, vector<4x256xf32>
    %c64_i32_1 = arith.constant 64 : i32
    %19 = tpu.dynamic_rotate %18 by %c64_i32_1 dim 1 : vector<4x256xf32>, i32 -> vector<4x256xf32>
    %20 = arith.select %3, %19, %1 : vector<4x256xi1>, vector<4x256xf32>
    %c0_2 = arith.constant 0 : index
    %c0_3 = arith.constant 0 : index
    %21 = vector.load %arg6[%c0_2, %c0_3] : memref<36x512xf32, #tpu.memory_space<vmem>>, vector<4x256xf32>
    tpu.vector_store %arg6[%c0_2, %c0_3], %20 {strides = array<i32>} : memref<36x512xf32, #tpu.memory_space<vmem>>, vector<4x256xf32>,
    %c48_i32_4 = arith.constant 48 : i32
    %22 = tpu.dynamic_rotate %18 by %c48_i32_4 dim 1 : vector<4x256xf32>, i32 -> vector<4x256xf32>
    %23 = arith.select %5, %22, %1 : vector<4x256xi1>, vector<4x256xf32>
    %c4 = arith.constant 4 : index
    %c0_5 = arith.constant 0 : index
    %24 = vector.load %arg6[%c4, %c0_5] : memref<36x512xf32, #tpu.memory_space<vmem>>, vector<4x256xf32>
    tpu.vector_store %arg6[%c4, %c0_5], %23 {strides = array<i32>} : memref<36x512xf32, #tpu.memory_space<vmem>>, vector<4x256xf32>,
    %c32_i32_6 = arith.constant 32 : i32
    %25 = tpu.dynamic_rotate %18 by %c32_i32_6 dim 1 : vector<4x256xf32>, i32 -> vector<4x256xf32>
    %26 = arith.select %7, %25, %1 : vector<4x256xi1>, vector<4x256xf32>
    %c8 = arith.constant 8 : index
    %c0_7 = arith.constant 0 : index
    %27 = vector.load %arg6[%c8, %c0_7] : memref<36x512xf32, #tpu.memory_space<vmem>>, vector<4x256xf32>
    tpu.vector_store %arg6[%c8, %c0_7], %26 {strides = array<i32>} : memref<36x512xf32, #tpu.memory_space<vmem>>, vector<4x256xf32>,
    %c16_i32_8 = arith.constant 16 : i32
    %28 = tpu.dynamic_rotate %18 by %c16_i32_8 dim 1 : vector<4x256xf32>, i32 -> vector<4x256xf32>
    %29 = arith.select %9, %28, %1 : vector<4x256xi1>, vector<4x256xf32>
    %c12 = arith.constant 12 : index
    %c0_9 = arith.constant 0 : index
    %30 = vector.load %arg6[%c12, %c0_9] : memref<36x512xf32, #tpu.memory_space<vmem>>, vector<4x256xf32>
    tpu.vector_store %arg6[%c12, %c0_9], %29 {strides = array<i32>} : memref<36x512xf32, #tpu.memory_space<vmem>>, vector<4x256xf32>,
    %c16 = arith.constant 16 : index
    %c0_10 = arith.constant 0 : index
    %31 = vector.load %arg6[%c16, %c0_10] : memref<36x512xf32, #tpu.memory_space<vmem>>, vector<4x256xf32>
    tpu.vector_store %arg6[%c16, %c0_10], %18 {strides = array<i32>} : memref<36x512xf32, #tpu.memory_space<vmem>>, vector<4x256xf32>,
    %c240_i32_11 = arith.constant 240 : i32
    %32 = tpu.dynamic_rotate %18 by %c240_i32_11 dim 1 : vector<4x256xf32>, i32 -> vector<4x256xf32>
    %33 = arith.select %11, %32, %1 : vector<4x256xi1>, vector<4x256xf32>
    %c20 = arith.constant 20 : index
    %c0_12 = arith.constant 0 : index
    %34 = vector.load %arg6[%c20, %c0_12] : memref<36x512xf32, #tpu.memory_space<vmem>>, vector<4x256xf32>
    tpu.vector_store %arg6[%c20, %c0_12], %33 {strides = array<i32>} : memref<36x512xf32, #tpu.memory_space<vmem>>, vector<4x256xf32>,
    %c224_i32_13 = arith.constant 224 : i32
    %35 = tpu.dynamic_rotate %18 by %c224_i32_13 dim 1 : vector<4x256xf32>, i32 -> vector<4x256xf32>
    %36 = arith.select %13, %35, %1 : vector<4x256xi1>, vector<4x256xf32>
    %c24 = arith.constant 24 : index
    %c0_14 = arith.constant 0 : index
    %37 = vector.load %arg6[%c24, %c0_14] : memref<36x512xf32, #tpu.memory_space<vmem>>, vector<4x256xf32>
    tpu.vector_store %arg6[%c24, %c0_14], %36 {strides = array<i32>} : memref<36x512xf32, #tpu.memory_space<vmem>>, vector<4x256xf32>,
    %c208_i32_15 = arith.constant 208 : i32
    %38 = tpu.dynamic_rotate %18 by %c208_i32_15 dim 1 : vector<4x256xf32>, i32 -> vector<4x256xf32>
    %39 = arith.select %15, %38, %1 : vector<4x256xi1>, vector<4x256xf32>
    %c28 = arith.constant 28 : index
    %c0_16 = arith.constant 0 : index
    %40 = vector.load %arg6[%c28, %c0_16] : memref<36x512xf32, #tpu.memory_space<vmem>>, vector<4x256xf32>
    tpu.vector_store %arg6[%c28, %c0_16], %39 {strides = array<i32>} : memref<36x512xf32, #tpu.memory_space<vmem>>, vector<4x256xf32>,
    %c192_i32_17 = arith.constant 192 : i32
    %41 = tpu.dynamic_rotate %18 by %c192_i32_17 dim 1 : vector<4x256xf32>, i32 -> vector<4x256xf32>
    %42 = arith.select %17, %41, %1 : vector<4x256xi1>, vector<4x256xf32>
    %c32 = arith.constant 32 : index
    %c0_18 = arith.constant 0 : index
    %43 = vector.load %arg6[%c32, %c0_18] : memref<36x512xf32, #tpu.memory_space<vmem>>, vector<4x256xf32>
    tpu.vector_store %arg6[%c32, %c0_18], %42 {strides = array<i32>} : memref<36x512xf32, #tpu.memory_space<vmem>>, vector<4x256xf32>,
    %c4_19 = arith.constant 4 : index
    %c0_20 = arith.constant 0 : index
    %44 = vector.load %arg1[%c4_19, %c0_20] : memref<8x256xf32, #tpu.memory_space<vmem>>, vector<4x256xf32>
    %c64_i32_21 = arith.constant 64 : i32
    %45 = tpu.dynamic_rotate %44 by %c64_i32_21 dim 1 : vector<4x256xf32>, i32 -> vector<4x256xf32>
    %46 = arith.select %3, %45, %1 : vector<4x256xi1>, vector<4x256xf32>
    %c0_22 = arith.constant 0 : index
    %c256 = arith.constant 256 : index
    %47 = vector.load %arg6[%c0_22, %c256] : memref<36x512xf32, #tpu.memory_space<vmem>>, vector<4x256xf32>
    tpu.vector_store %arg6[%c0_22, %c256], %46 {strides = array<i32>} : memref<36x512xf32, #tpu.memory_space<vmem>>, vector<4x256xf32>,
    %c48_i32_23 = arith.constant 48 : i32
    %48 = tpu.dynamic_rotate %44 by %c48_i32_23 dim 1 : vector<4x256xf32>, i32 -> vector<4x256xf32>
    %49 = arith.select %5, %48, %1 : vector<4x256xi1>, vector<4x256xf32>
    %c4_24 = arith.constant 4 : index
    %c256_25 = arith.constant 256 : index
    %50 = vector.load %arg6[%c4_24, %c256_25] : memref<36x512xf32, #tpu.memory_space<vmem>>, vector<4x256xf32>
    tpu.vector_store %arg6[%c4_24, %c256_25], %49 {strides = array<i32>} : memref<36x512xf32, #tpu.memory_space<vmem>>, vector<4x256xf32>,
    %c32_i32_26 = arith.constant 32 : i32
    %51 = tpu.dynamic_rotate %44 by %c32_i32_26 dim 1 : vector<4x256xf32>, i32 -> vector<4x256xf32>
    %52 = arith.select %7, %51, %1 : vector<4x256xi1>, vector<4x256xf32>
    %c8_27 = arith.constant 8 : index
    %c256_28 = arith.constant 256 : index
    %53 = vector.load %arg6[%c8_27, %c256_28] : memref<36x512xf32, #tpu.memory_space<vmem>>, vector<4x256xf32>
    tpu.vector_store %arg6[%c8_27, %c256_28], %52 {strides = array<i32>} : memref<36x512xf32, #tpu.memory_space<vmem>>, vector<4x256xf32>,
    %c16_i32_29 = arith.constant 16 : i32
    %54 = tpu.dynamic_rotate %44 by %c16_i32_29 dim 1 : vector<4x256xf32>, i32 -> vector<4x256xf32>
    %55 = arith.select %9, %54, %1 : vector<4x256xi1>, vector<4x256xf32>
    %c12_30 = arith.constant 12 : index
    %c256_31 = arith.constant 256 : index
    %56 = vector.load %arg6[%c12_30, %c256_31] : memref<36x512xf32, #tpu.memory_space<vmem>>, vector<4x256xf32>
    tpu.vector_store %arg6[%c12_30, %c256_31], %55 {strides = array<i32>} : memref<36x512xf32, #tpu.memory_space<vmem>>, vector<4x256xf32>,
    %c16_32 = arith.constant 16 : index
    %c256_33 = arith.constant 256 : index
    %57 = vector.load %arg6[%c16_32, %c256_33] : memref<36x512xf32, #tpu.memory_space<vmem>>, vector<4x256xf32>
    tpu.vector_store %arg6[%c16_32, %c256_33], %44 {strides = array<i32>} : memref<36x512xf32, #tpu.memory_space<vmem>>, vector<4x256xf32>,
    %c240_i32_34 = arith.constant 240 : i32
    %58 = tpu.dynamic_rotate %44 by %c240_i32_34 dim 1 : vector<4x256xf32>, i32 -> vector<4x256xf32>
    %59 = arith.select %11, %58, %1 : vector<4x256xi1>, vector<4x256xf32>
    %c20_35 = arith.constant 20 : index
    %c256_36 = arith.constant 256 : index
    %60 = vector.load %arg6[%c20_35, %c256_36] : memref<36x512xf32, #tpu.memory_space<vmem>>, vector<4x256xf32>
    tpu.vector_store %arg6[%c20_35, %c256_36], %59 {strides = array<i32>} : memref<36x512xf32, #tpu.memory_space<vmem>>, vector<4x256xf32>,
    %c224_i32_37 = arith.constant 224 : i32
    %61 = tpu.dynamic_rotate %44 by %c224_i32_37 dim 1 : vector<4x256xf32>, i32 -> vector<4x256xf32>
    %62 = arith.select %13, %61, %1 : vector<4x256xi1>, vector<4x256xf32>
    %c24_38 = arith.constant 24 : index
    %c256_39 = arith.constant 256 : index
    %63 = vector.load %arg6[%c24_38, %c256_39] : memref<36x512xf32, #tpu.memory_space<vmem>>, vector<4x256xf32>
    tpu.vector_store %arg6[%c24_38, %c256_39], %62 {strides = array<i32>} : memref<36x512xf32, #tpu.memory_space<vmem>>, vector<4x256xf32>,
    %c208_i32_40 = arith.constant 208 : i32
    %64 = tpu.dynamic_rotate %44 by %c208_i32_40 dim 1 : vector<4x256xf32>, i32 -> vector<4x256xf32>
    %65 = arith.select %15, %64, %1 : vector<4x256xi1>, vector<4x256xf32>
    %c28_41 = arith.constant 28 : index
    %c256_42 = arith.constant 256 : index
    %66 = vector.load %arg6[%c28_41, %c256_42] : memref<36x512xf32, #tpu.memory_space<vmem>>, vector<4x256xf32>
    tpu.vector_store %arg6[%c28_41, %c256_42], %65 {strides = array<i32>} : memref<36x512xf32, #tpu.memory_space<vmem>>, vector<4x256xf32>,
    %c192_i32_43 = arith.constant 192 : i32
    %67 = tpu.dynamic_rotate %44 by %c192_i32_43 dim 1 : vector<4x256xf32>, i32 -> vector<4x256xf32>
    %68 = arith.select %17, %67, %1 : vector<4x256xi1>, vector<4x256xf32>
    %c32_44 = arith.constant 32 : index
    %c256_45 = arith.constant 256 : index
    %69 = vector.load %arg6[%c32_44, %c256_45] : memref<36x512xf32, #tpu.memory_space<vmem>>, vector<4x256xf32>
    tpu.vector_store %arg6[%c32_44, %c256_45], %68 {strides = array<i32>} : memref<36x512xf32, #tpu.memory_space<vmem>>, vector<4x256xf32>,
    %c0_46 = arith.constant 0 : index
    %c0_47 = arith.constant 0 : index
    %70 = vector.load %arg2[%c0_46, %c0_47] : memref<8x36xf32, #tpu.memory_space<vmem>>, vector<8x36xf32>
    %c0_48 = arith.constant 0 : index
    %c0_49 = arith.constant 0 : index
    %71 = vector.load %arg6[%c0_48, %c0_49] : memref<36x512xf32, #tpu.memory_space<vmem>>, vector<36x512xf32>
    %cst_50 = arith.constant dense<0.000000e+00> : vector<8x512xf32>
    %72 = tpu.matmul %70, %71, %cst_50 {dimension_numbers = #tpu.dot_dimension_numbers<[1], [0], [0], [1], [0, 0, 1, 1], [], []>} : vector<8x36xf32>, vector<36x512xf32>, vector<8x512xf32> -> vector<8x512xf32>
    %c0_51 = arith.constant 0 : index
    %c0_52 = arith.constant 0 : index
    %73 = vector.load %arg3[%c0_51, %c0_52] : memref<8x1xf32, #tpu.memory_space<vmem>>, vector<8x1xf32>
    %74 = vector.broadcast %73 : vector<8x1xf32> to vector<8x512xf32>
    %75 = arith.mulf %72, %74 : vector<8x512xf32>
    %c0_53 = arith.constant 0 : index
    %c0_54 = arith.constant 0 : index
    %76 = vector.load %arg4[%c0_53, %c0_54] : memref<8x1xf32, #tpu.memory_space<vmem>>, vector<8x1xf32>
    %77 = vector.broadcast %76 : vector<8x1xf32> to vector<8x512xf32>
    %78 = arith.addf %75, %77 : vector<8x512xf32>
    %cst_55 = arith.constant 3.000000e-01 : f32
    %79 = vector.broadcast %cst_55 : f32 to vector<8x512xf32>
    %80 = arith.mulf %79, %78 : vector<8x512xf32>
    %81 = arith.maximumf %78, %80 : vector<8x512xf32>
    %c496_i32 = arith.constant 496 : i32
    %82 = tpu.dynamic_rotate %81 by %c496_i32 dim 1 : vector<8x512xf32>, i32 -> vector<8x512xf32>
    %c480_i32 = arith.constant 480 : i32
    %83 = tpu.dynamic_rotate %81 by %c480_i32 dim 1 : vector<8x512xf32>, i32 -> vector<8x512xf32>
    %c464_i32 = arith.constant 464 : i32
    %84 = tpu.dynamic_rotate %81 by %c464_i32 dim 1 : vector<8x512xf32>, i32 -> vector<8x512xf32>
    %85 = arith.maximumf %81, %82 : vector<8x512xf32>
    %86 = arith.maximumf %83, %84 : vector<8x512xf32>
    %87 = arith.maximumf %85, %86 : vector<8x512xf32>
    %88 = vector.extract_strided_slice %87 {offsets = [0, 0], sizes = [8, 256], strides = [1, 1]} : vector<8x512xf32> to vector<8x256xf32>
    %89 = vector.shape_cast %88 : vector<8x256xf32> to vector<8x4x64xf32>
    %90 = vector.extract_strided_slice %89 {offsets = [0, 0, 0], sizes = [8, 4, 16], strides = [1, 1, 1]} : vector<8x4x64xf32> to vector<8x4x16xf32>
    %91 = vector.shape_cast %90 : vector<8x4x16xf32> to vector<8x64xf32>
    %c0_56 = arith.constant 0 : index
    %c0_57 = arith.constant 0 : index
    %92 = vector.load %arg5[%c0_56, %c0_57] : memref<16x64xf32, #tpu.memory_space<vmem>>, vector<8x64xf32>
    tpu.vector_store %arg5[%c0_56, %c0_57], %91 {strides = array<i32>} : memref<16x64xf32, #tpu.memory_space<vmem>>, vector<8x64xf32>,
    %93 = vector.extract_strided_slice %87 {offsets = [0, 256], sizes = [8, 256], strides = [1, 1]} : vector<8x512xf32> to vector<8x256xf32>
    %94 = vector.shape_cast %93 : vector<8x256xf32> to vector<8x4x64xf32>
    %95 = vector.extract_strided_slice %94 {offsets = [0, 0, 0], sizes = [8, 4, 16], strides = [1, 1, 1]} : vector<8x4x64xf32> to vector<8x4x16xf32>
    %96 = vector.shape_cast %95 : vector<8x4x16xf32> to vector<8x64xf32>
    %c8_58 = arith.constant 8 : index
    %c0_59 = arith.constant 0 : index
    %97 = vector.load %arg5[%c8_58, %c0_59] : memref<16x64xf32, #tpu.memory_space<vmem>>, vector<8x64xf32>
    tpu.vector_store %arg5[%c8_58, %c0_59], %96 {strides = array<i32>} : memref<16x64xf32, #tpu.memory_space<vmem>>, vector<8x64xf32>,
    return
  }
  func.func @transform_0(%arg0: i32) -> (i32, i32) {
    %c0_i32 = arith.constant 0 : i32
    %c0_i32_0 = arith.constant 0 : i32
    return %arg0, %c0_i32 : i32, i32
  }
  func.func @transform_1(%arg0: i32) -> (i32, i32) {
    %c0_i32 = arith.constant 0 : i32
    %c0_i32_0 = arith.constant 0 : i32
    %c0_i32_1 = arith.constant 0 : i32
    return %c0_i32, %c0_i32_0 : i32, i32
  }
  func.func @transform_2(%arg0: i32) -> (i32, i32) {
    %c0_i32 = arith.constant 0 : i32
    %c0_i32_0 = arith.constant 0 : i32
    %c0_i32_1 = arith.constant 0 : i32
    return %c0_i32, %c0_i32_0 : i32, i32
  }
  func.func @transform_3(%arg0: i32) -> (i32, i32) {
    %c0_i32 = arith.constant 0 : i32
    %c0_i32_0 = arith.constant 0 : i32
    %c0_i32_1 = arith.constant 0 : i32
    return %c0_i32, %c0_i32_0 : i32, i32
  }
  func.func @transform_4(%arg0: i32) -> (i32, i32) {
    %c0_i32 = arith.constant 0 : i32
    %c0_i32_0 = arith.constant 0 : i32
    return %arg0, %c0_i32 : i32, i32
  }
}

</mosaic_0001>

<llo_original>
// kernel: tpu_custom_call.1
$region0: #{tpu_custom_call.1}
  #allocation0 [shape = 'u32[]', space=smem, size = 0x4, offset = 0x4, fixed_abs, tag = 'smem constant byte address 0x4 - core index']
  #allocation1 [shape = 'u32[144,128]{1,0:T(1,128)}', space=vmem, size = 0x12000, scoped, tag = 'internal scratch']
  #allocation2 [shape = 'f32[36,512]{1,0:T(8,128)}', space=vmem, size = 0x14000, scoped, tag = 'scratch operand']
  %s0 = inlined_call_operand.vmem [shape: f32[8,256], index: 0, kind: input, shape index: {}]
  %s1 = inlined_call_operand.hbm [shape: f32[8,36], index: 1, kind: input, shape index: {}]
  %s2 = inlined_call_operand.vmem [shape: f32[8,1], index: 2, kind: input, shape index: {}]
  %s3 = inlined_call_operand.vmem [shape: f32[8,1], index: 3, kind: input, shape index: {}]
  %s4 = inlined_call_operand.hbm [shape: f32[16,64], index: 4, kind: output, shape index: {}]
  %s5 = sld [smem:[#allocation0]]
  $region30: #{tpu_custom_call.1} parent=0
    _
  %s7 = ssub.s32 1, %s5
  %s8 = scalar_select 0, %s7, %s5
  $region1: #{tpu_custom_call.1} parent=0
    #allocation3 [shape = 'u8[4096]{0}', space=vmem, size = 0x1000, scoped, tag = 'input window, operand 1, single buffered']
    #allocation4 [shape = 's32[1]{0}', space=sflag, size = 0x4, scoped, tag = 'scoped memory for tpu_custom_call.1']
    #allocation5 [shape = 's32[1]{0}', space=sflag, size = 0x4, scoped, tag = 'scoped memory for tpu_custom_call.1']
    #allocation6 [shape = 'u8[8192]{0}', space=vmem, size = 0x2000, scoped, tag = 'output window, operand 0, single buffered']
    %9 = vsyncpa [#allocation4], 0
    %10 = vsyncpa [#allocation5], 0
    // Predicated region
    $region2: #{tpu_custom_call.1} parent=1 // pred_check
      _
    $region3: #{tpu_custom_call.1} parent=1 // pred_check_branch
      %12 = sbr.rel (0) target = $region5
    $region4: #{tpu_custom_call.1} parent=1 // pred_region
      _
    $region5: #{tpu_custom_call.1} parent=1 // pred_fallthru
      _
    // Predicated region
    $region6: #{tpu_custom_call.1} parent=1 // pred_check
      _
    $region7: #{tpu_custom_call.1} parent=1 // pred_check_branch
      %14 = sbr.rel (0) target = $region9
    $region8: #{tpu_custom_call.1} parent=1 // pred_region
      %s16 = ssub.s32 128, 128
      %17 = vsyncadd [#allocation4], %s16
      %s19 = sshll.u32 [#allocation3], 4
      %s20 = int_to_ptr.vmem [resolvable:$true] %s19
      %22 = dma.hbm_to_vmem [thread:$0]  %s1, 128, %s20, [#allocation4]
    $region9: #{tpu_custom_call.1} parent=1 // pred_fallthru
      _
    // Predicated region
    $region10: #{tpu_custom_call.1} parent=1 // pred_check
      _
    $region11: #{tpu_custom_call.1} parent=1 // pred_check_branch
      %24 = sbr.rel (0) target = $region13
    $region12: #{tpu_custom_call.1} parent=1 // pred_region
      _
    $region13: #{tpu_custom_call.1} parent=1 // pred_fallthru
      _
    // Predicated region
    $region14: #{tpu_custom_call.1} parent=1 // pred_check
      _
    $region15: #{tpu_custom_call.1} parent=1 // pred_check_branch
      %26 = sbr.rel (0) target = $region17
    $region16: #{tpu_custom_call.1} parent=1 // pred_region
      _
    $region17: #{tpu_custom_call.1} parent=1 // pred_fallthru
      _
    // Predicated region
    $region18: #{tpu_custom_call.1} parent=1 // pred_check
      _
    $region19: #{tpu_custom_call.1} parent=1 // pred_check_branch
      %28 = sbr.rel (0) target = $region21
    $region20: #{tpu_custom_call.1} parent=1 // pred_region
      %29 = dma.done [#allocation4], 128
    $region21: #{tpu_custom_call.1} parent=1 // pred_fallthru
      _
    %v30 = vlaneseq
    %v31 = vand.u32 %v30, 127
    %v32 = vadd.s32 %v31, 128
    %vm33 = vcmp.ge.s32.totalorder %v31, 64
    %vm34 = vcmp.ge.s32.totalorder %v32, 64
    %vm35 = vcmp.ge.s32.totalorder %v31, 48
    %vm36 = vcmp.ge.s32.totalorder %v32, 48
    %vm37 = vcmp.ge.s32.totalorder %v31, 32
    %vm38 = vcmp.ge.s32.totalorder %v32, 32
    %vm39 = vcmp.ge.s32.totalorder %v31, 16
    %vm40 = vcmp.ge.s32.totalorder %v32, 16
    %vm41 = vcmp.lt.s32.totalorder %v31, 240
    %vm42 = vcmp.lt.s32.totalorder %v32, 240
    %vm43 = vcmp.lt.s32.totalorder %v31, 224
    %vm44 = vcmp.lt.s32.totalorder %v32, 224
    %vm45 = vcmp.lt.s32.totalorder %v31, 208
    %vm46 = vcmp.lt.s32.totalorder %v32, 208
    %vm47 = vcmp.lt.s32.totalorder %v31, 192
    %vm48 = vcmp.lt.s32.totalorder %v32, 192
    %v49 = vld [vmem:[%s0] sm:$0xf]
    %v50 = vld [vmem:[%s0 + $0x8] sm:$0xf]
    %51 = vrot.lane.b32.xlu0 %v49, 64
    %v52 = vpop.permute.xlu0 %51
    %53 = vrot.lane.b32.xlu0 %v50, 64
    %v54 = vpop.permute.xlu0 %53
    %vm55 = vcmp.lt.s32.totalorder %v31, 64
    %v56 = vsel %vm55, %v52, %v54
    %v57 = vsel %vm55, %v54, %v52
    %v58 = vsel %vm33, %v57, 0.0
    %v59 = vsel %vm34, %v56, 0.0
    %60 = vst [vmem:[#allocation2] sm:$0xf] %v58
    %61 = vst [vmem:[#allocation2 + $0x8] sm:$0xf] %v59
    %62 = vrot.lane.b32.xlu0 %v49, 48
    %v63 = vpop.permute.xlu0 %62
    %64 = vrot.lane.b32.xlu0 %v50, 48
    %v65 = vpop.permute.xlu0 %64
    %vm66 = vcmp.lt.s32.totalorder %v31, 48
    %v67 = vsel %vm66, %v63, %v65
    %v68 = vsel %vm66, %v65, %v63
    %v69 = vsel %vm35, %v68, 0.0
    %v70 = vsel %vm36, %v67, 0.0
    %v73 = vrot.slane %v69, 4
    %v74 = vrot.slane %v70, 4
    %77 = vst [vmem:[#allocation2] sm:$0xf0] %v73
    %78 = vst [vmem:[#allocation2 + $0x8] sm:$0xf0] %v74
    %79 = vrot.lane.b32.xlu0 %v49, 32
    %v80 = vpop.permute.xlu0 %79
    %81 = vrot.lane.b32.xlu0 %v50, 32
    %v82 = vpop.permute.xlu0 %81
    %vm83 = vcmp.lt.s32.totalorder %v31, 32
    %v84 = vsel %vm83, %v80, %v82
    %v85 = vsel %vm83, %v82, %v80
    %v86 = vsel %vm37, %v85, 0.0
    %v87 = vsel %vm38, %v84, 0.0
    %88 = vst [vmem:[#allocation2 + $0x20] sm:$0xf] %v86
    %89 = vst [vmem:[#allocation2 + $0x28] sm:$0xf] %v87
    %90 = vrot.lane.b32.xlu0 %v49, 16
    %v91 = vpop.permute.xlu0 %90
    %92 = vrot.lane.b32.xlu0 %v50, 16
    %v93 = vpop.permute.xlu0 %92
    %vm94 = vcmp.lt.s32.totalorder %v31, 16
    %v95 = vsel %vm94, %v91, %v93
    %v96 = vsel %vm94, %v93, %v91
    %v97 = vsel %vm39, %v96, 0.0
    %v98 = vsel %vm40, %v95, 0.0
    %v101 = vrot.slane %v97, 4
    %v102 = vrot.slane %v98, 4
    %105 = vst [vmem:[#allocation2 + $0x20] sm:$0xf0] %v101
    %106 = vst [vmem:[#allocation2 + $0x28] sm:$0xf0] %v102
    %107 = vst [vmem:[#allocation2 + $0x40] sm:$0xf] %v49
    %108 = vst [vmem:[#allocation2 + $0x48] sm:$0xf] %v50
    %109 = vrot.lane.b32.xlu0 %v49, 112
    %v110 = vpop.permute.xlu0 %109
    %111 = vrot.lane.b32.xlu0 %v50, 112
    %v112 = vpop.permute.xlu0 %111
    %vm113 = vcmp.lt.s32.totalorder %v31, 112
    %v114 = vsel %vm113, %v110, %v112
    %v115 = vsel %vm113, %v112, %v110
    %v116 = vsel %vm41, %v114, 0.0
    %v117 = vsel %vm42, %v115, 0.0
    %v120 = vrot.slane %v116, 4
    %v121 = vrot.slane %v117, 4
    %124 = vst [vmem:[#allocation2 + $0x40] sm:$0xf0] %v120
    %125 = vst [vmem:[#allocation2 + $0x48] sm:$0xf0] %v121
    %126 = vrot.lane.b32.xlu0 %v49, 96
    %v127 = vpop.permute.xlu0 %126
    %128 = vrot.lane.b32.xlu0 %v50, 96
    %v129 = vpop.permute.xlu0 %128
    %vm130 = vcmp.lt.s32.totalorder %v31, 96
    %v131 = vsel %vm130, %v127, %v129
    %v132 = vsel %vm130, %v129, %v127
    %v133 = vsel %vm43, %v131, 0.0
    %v134 = vsel %vm44, %v132, 0.0
    %135 = vst [vmem:[#allocation2 + $0x60] sm:$0xf] %v133
    %136 = vst [vmem:[#allocation2 + $0x68] sm:$0xf] %v134
    %137 = vrot.lane.b32.xlu0 %v49, 80
    %v138 = vpop.permute.xlu0 %137
    %139 = vrot.lane.b32.xlu0 %v50, 80
    %v140 = vpop.permute.xlu0 %139
    %vm141 = vcmp.lt.s32.totalorder %v31, 80
    %v142 = vsel %vm141, %v138, %v140
    %v143 = vsel %vm141, %v140, %v138
    %v144 = vsel %vm45, %v142, 0.0
    %v145 = vsel %vm46, %v143, 0.0
    %v148 = vrot.slane %v144, 4
    %v149 = vrot.slane %v145, 4
    %152 = vst [vmem:[#allocation2 + $0x60] sm:$0xf0] %v148
    %153 = vst [vmem:[#allocation2 + $0x68] sm:$0xf0] %v149
    %v154 = vsel %vm47, %v56, 0.0
    %v155 = vsel %vm48, %v57, 0.0
    %156 = vst [vmem:[#allocation2 + $0x80] sm:$0xf] %v154
    %157 = vst [vmem:[#allocation2 + $0x88] sm:$0xf] %v155
    %v158 = vld [vmem:[%s0] sm:$0xf0]
    %v159 = vld [vmem:[%s0 + $0x8] sm:$0xf0]
    %v162 = vrot.slane %v158, 4
    %v163 = vrot.slane %v159, 4
    %166 = vrot.lane.b32.xlu0 %v162, 64
    %v167 = vpop.permute.xlu0 %166
    %168 = vrot.lane.b32.xlu0 %v163, 64
    %v169 = vpop.permute.xlu0 %168
    %v170 = vsel %vm55, %v167, %v169
    %v171 = vsel %vm55, %v169, %v167
    %v172 = vsel %vm33, %v171, 0.0
    %v173 = vsel %vm34, %v170, 0.0
    %174 = vst [vmem:[#allocation2 + $0x10] sm:$0xf] %v172
    %175 = vst [vmem:[#allocation2 + $0x18] sm:$0xf] %v173
    %176 = vrot.lane.b32.xlu0 %v162, 48
    %v177 = vpop.permute.xlu0 %176
    %178 = vrot.lane.b32.xlu0 %v163, 48
    %v179 = vpop.permute.xlu0 %178
    %v180 = vsel %vm66, %v177, %v179
    %v181 = vsel %vm66, %v179, %v177
    %v182 = vsel %vm35, %v181, 0.0
    %v183 = vsel %vm36, %v180, 0.0
    %v186 = vrot.slane %v182, 4
    %v187 = vrot.slane %v183, 4
    %190 = vst [vmem:[#allocation2 + $0x10] sm:$0xf0] %v186
    %191 = vst [vmem:[#allocation2 + $0x18] sm:$0xf0] %v187
    %192 = vrot.lane.b32.xlu0 %v162, 32
    %v193 = vpop.permute.xlu0 %192
    %194 = vrot.lane.b32.xlu0 %v163, 32
    %v195 = vpop.permute.xlu0 %194
    %v196 = vsel %vm83, %v193, %v195
    %v197 = vsel %vm83, %v195, %v193
    %v198 = vsel %vm37, %v197, 0.0
    %v199 = vsel %vm38, %v196, 0.0
    %200 = vst [vmem:[#allocation2 + $0x30] sm:$0xf] %v198
    %201 = vst [vmem:[#allocation2 + $0x38] sm:$0xf] %v199
    %202 = vrot.lane.b32.xlu0 %v162, 16
    %v203 = vpop.permute.xlu0 %202
    %204 = vrot.lane.b32.xlu0 %v163, 16
    %v205 = vpop.permute.xlu0 %204
    %v206 = vsel %vm94, %v203, %v205
    %v207 = vsel %vm94, %v205, %v203
    %v208 = vsel %vm39, %v207, 0.0
    %v209 = vsel %vm40, %v206, 0.0
    %v212 = vrot.slane %v208, 4
    %v213 = vrot.slane %v209, 4
    %216 = vst [vmem:[#allocation2 + $0x30] sm:$0xf0] %v212
    %217 = vst [vmem:[#allocation2 + $0x38] sm:$0xf0] %v213
    %218 = vst [vmem:[#allocation2 + $0x50] sm:$0xf] %v162
    %219 = vst [vmem:[#allocation2 + $0x58] sm:$0xf] %v163
    %220 = vrot.lane.b32.xlu0 %v162, 112
    %v221 = vpop.permute.xlu0 %220
    %222 = vrot.lane.b32.xlu0 %v163, 112
    %v223 = vpop.permute.xlu0 %222
    %v224 = vsel %vm113, %v221, %v223
    %v225 = vsel %vm113, %v223, %v221
    %v226 = vsel %vm41, %v224, 0.0
    %v227 = vsel %vm42, %v225, 0.0
    %v230 = vrot.slane %v226, 4
    %v231 = vrot.slane %v227, 4
    %234 = vst [vmem:[#allocation2 + $0x50] sm:$0xf0] %v230
    %235 = vst [vmem:[#allocation2 + $0x58] sm:$0xf0] %v231
    %236 = vrot.lane.b32.xlu0 %v162, 96
    %v237 = vpop.permute.xlu0 %236
    %238 = vrot.lane.b32.xlu0 %v163, 96
    %v239 = vpop.permute.xlu0 %238
    %v240 = vsel %vm130, %v237, %v239
    %v241 = vsel %vm130, %v239, %v237
    %v242 = vsel %vm43, %v240, 0.0
    %v243 = vsel %vm44, %v241, 0.0
    %244 = vst [vmem:[#allocation2 + $0x70] sm:$0xf] %v242
    %245 = vst [vmem:[#allocation2 + $0x78] sm:$0xf] %v243
    %246 = vrot.lane.b32.xlu0 %v162, 80
    %v247 = vpop.permute.xlu0 %246
    %248 = vrot.lane.b32.xlu0 %v163, 80
    %v249 = vpop.permute.xlu0 %248
    %v250 = vsel %vm141, %v247, %v249
    %v251 = vsel %vm141, %v249, %v247
    %v252 = vsel %vm45, %v250, 0.0
    %v253 = vsel %vm46, %v251, 0.0
    %v256 = vrot.slane %v252, 4
    %v257 = vrot.slane %v253, 4
    %260 = vst [vmem:[#allocation2 + $0x70] sm:$0xf0] %v256
    %261 = vst [vmem:[#allocation2 + $0x78] sm:$0xf0] %v257
    %v262 = vsel %vm47, %v170, 0.0
    %v263 = vsel %vm48, %v171, 0.0
    %264 = vst [vmem:[#allocation2 + $0x90] sm:$0xf] %v262
    %265 = vst [vmem:[#allocation2 + $0x98] sm:$0xf] %v263
    %v266 = vld [vmem:[#allocation3] sm:$0xff]
    %v267 = vld [vmem:[#allocation2] sm:$0xff]
    %v268 = vld [vmem:[#allocation2 + $0x8] sm:$0xff]
    %v269 = vld [vmem:[#allocation2 + $0x10] sm:$0xff]
    %v270 = vld [vmem:[#allocation2 + $0x18] sm:$0xff]
    %v271 = vld [vmem:[#allocation2 + $0x20] sm:$0xff]
    %v272 = vld [vmem:[#allocation2 + $0x28] sm:$0xff]
    %v273 = vld [vmem:[#allocation2 + $0x30] sm:$0xff]
    %v274 = vld [vmem:[#allocation2 + $0x38] sm:$0xff]
    %v275 = vld [vmem:[#allocation2 + $0x40] sm:$0xff]
    %v276 = vld [vmem:[#allocation2 + $0x48] sm:$0xff]
    %v277 = vld [vmem:[#allocation2 + $0x50] sm:$0xff]
    %v278 = vld [vmem:[#allocation2 + $0x58] sm:$0xff]
    %v279 = vld [vmem:[#allocation2 + $0x60] sm:$0xff]
    %v280 = vld [vmem:[#allocation2 + $0x68] sm:$0xff]
    %v281 = vld [vmem:[#allocation2 + $0x70] sm:$0xff]
    %v282 = vld [vmem:[#allocation2 + $0x78] sm:$0xff]
    %v283 = vld [vmem:[#allocation2 + $0x80] sm:$0xf]
    %v284 = vld [vmem:[#allocation2 + $0x88] sm:$0xf]
    %v285 = vld [vmem:[#allocation2 + $0x90] sm:$0xf]
    %v286 = vld [vmem:[#allocation2 + $0x98] sm:$0xf]
    %vm287 = vcmask 293888
    %v289 = vsel %vm287, %v266, 0
    %vm291 = vcmask 1043456
    %v293 = vsel %vm291, %v283, 0
    %v296 = vsel %vm291, %v284, 0
    %v299 = vsel %vm291, %v285, 0
    %v302 = vsel %vm291, %v286, 0
    %304 = vmatprep.subr.mxu0 %v268
    %305 = vmatpush1.msra.mxu0 %v267
    %306 = vmatprep.subr.mxu0 %v272
    %307 = vmatpush1.msra.mxu0 %v271
    %308 = vmatprep.subr.mxu0 %v276
    %309 = vmatpush1.msra.mxu0 %v275
    %310 = vmatprep.subr.mxu0 %v280
    %311 = vmatpush1.msra.mxu0 %v279
    %312 = vmatprep.subr.mxu0 %v296
    %313 = vmatpush1.msra.mxu0 %v293
    %314 = vmatprep.subr.mxu0 0.0
    %315 = vmatpush1.msra.mxu0 0.0
    %316 = vmatprep.subr.mxu0 0.0
    %317 = vmatpush1.msra.mxu0 0.0
    %318 = vmatprep.subr.mxu0 0.0
    %319 = vmatpush1.msra.mxu0 0.0
    %320 = vmatprep.subr.mxu0 0.0
    %321 = vmatpush1.msra.mxu0 0.0
    %322 = vmatprep.subr.mxu0 0.0
    %323 = vmatpush1.msra.mxu0 0.0
    %324 = vmatprep.subr.mxu0 0.0
    %325 = vmatpush1.msra.mxu0 0.0
    %326 = vmatprep.subr.mxu0 0.0
    %327 = vmatpush1.msra.mxu0 0.0
    %328 = vmatprep.subr.mxu0 0.0
    %329 = vmatpush1.msra.mxu0 0.0
    %330 = vmatprep.subr.mxu0 0.0
    %331 = vmatpush1.msra.mxu0 0.0
    %332 = vmatprep.subr.mxu0 0.0
    %333 = vmatpush1.msra.mxu0 0.0
    %334 = vmatprep.subr.mxu0 0.0
    %335 = vmatpush1.msra.mxu0 0.0
    %336 = vmatprep.subr.mxu0 0.0
    %337 = vmatpush1.msra.mxu0 0.0
    %338 = vmatprep.subr.mxu0 0.0
    %339 = vmatpush1.msra.mxu0 0.0
    %340 = vmatprep.subr.mxu0 0.0
    %341 = vmatpush1.msra.mxu0 0.0
    %342 = vmatprep.subr.mxu0 0.0
    %343 = vmatpush1.msra.mxu0 0.0
    %344 = vmatprep.subr.mxu0 0.0
    %345 = vmatpush1.msra.mxu0 0.0
    %346 = vmatprep.subr.mxu0 0.0
    %347 = vmatpush1.msra.mxu0 0.0
    %348 = vmatprep.subr.mxu0 0.0
    %349 = vmatpush1.msra.mxu0 0.0
    %350 = vmatprep.subr.mxu0 0.0
    %351 = vmatpush1.msra.mxu0 0.0
    %352 = vmatprep.subr.mxu0 0.0
    %353 = vmatpush1.msra.mxu0 0.0
    %354 = vmatprep.subr.mxu0 0.0
    %355 = vmatpush1.msra.mxu0 0.0
    %356 = vmatprep.subr.mxu0 0.0
    %357 = vmatpush1.msra.mxu0 0.0
    %358 = vmatprep.subr.mxu0 0.0
    %359 = vmatpush1.msra.mxu0 0.0
    %360 = vmatprep.subr.mxu0 0.0
    %361 = vmatpush1.msra.mxu0 0.0
    %362 = vmatprep.subr.mxu0 0.0
    %363 = vmatpush1.msra.mxu0 0.0
    %364 = vmatprep.subr.mxu0 0.0
    %365 = vmatpush1.msra.mxu0 0.0
    %366 = vmatprep.subr.mxu0 0.0
    %367 = vmatpush1.msra.mxu0 0.0
    %368 = vmatprep.mubr.f32.mxu0 0.0
    %369 = vmatmul.mubr.f32.gmra.mrb[0].mxu0 %v289
    %v370 = vpop.f32.mrb[0].mxu0
    %v371 = vadd.f32 0.0, %v370
    %v372 = vpop.f32.mrb[0].mxu0
    %v373 = vadd.f32 0.0, %v372
    %374 = vdwg.mxu0
    %375 = vmatprep.subr.mxu0 %v270
    %376 = vmatpush1.msra.mxu0 %v269
    %377 = vmatprep.subr.mxu0 %v274
    %378 = vmatpush1.msra.mxu0 %v273
    %379 = vmatprep.subr.mxu0 %v278
    %380 = vmatpush1.msra.mxu0 %v277
    %381 = vmatprep.subr.mxu0 %v282
    %382 = vmatpush1.msra.mxu0 %v281
    %383 = vmatprep.subr.mxu0 %v302
    %384 = vmatpush1.msra.mxu0 %v299
    %385 = vmatprep.subr.mxu0 0.0
    %386 = vmatpush1.msra.mxu0 0.0
    %387 = vmatprep.subr.mxu0 0.0
    %388 = vmatpush1.msra.mxu0 0.0
    %389 = vmatprep.subr.mxu0 0.0
    %390 = vmatpush1.msra.mxu0 0.0
    %391 = vmatprep.subr.mxu0 0.0
    %392 = vmatpush1.msra.mxu0 0.0
    %393 = vmatprep.subr.mxu0 0.0
    %394 = vmatpush1.msra.mxu0 0.0
    %395 = vmatprep.subr.mxu0 0.0
    %396 = vmatpush1.msra.mxu0 0.0
    %397 = vmatprep.subr.mxu0 0.0
    %398 = vmatpush1.msra.mxu0 0.0
    %399 = vmatprep.subr.mxu0 0.0
    %400 = vmatpush1.msra.mxu0 0.0
    %401 = vmatprep.subr.mxu0 0.0
    %402 = vmatpush1.msra.mxu0 0.0
    %403 = vmatprep.subr.mxu0 0.0
    %404 = vmatpush1.msra.mxu0 0.0
    %405 = vmatprep.subr.mxu0 0.0
    %406 = vmatpush1.msra.mxu0 0.0
    %407 = vmatprep.subr.mxu0 0.0
    %408 = vmatpush1.msra.mxu0 0.0
    %409 = vmatprep.subr.mxu0 0.0
    %410 = vmatpush1.msra.mxu0 0.0
    %411 = vmatprep.subr.mxu0 0.0
    %412 = vmatpush1.msra.mxu0 0.0
    %413 = vmatprep.subr.mxu0 0.0
    %414 = vmatpush1.msra.mxu0 0.0
    %415 = vmatprep.subr.mxu0 0.0
    %416 = vmatpush1.msra.mxu0 0.0
    %417 = vmatprep.subr.mxu0 0.0
    %418 = vmatpush1.msra.mxu0 0.0
    %419 = vmatprep.subr.mxu0 0.0
    %420 = vmatpush1.msra.mxu0 0.0
    %421 = vmatprep.subr.mxu0 0.0
    %422 = vmatpush1.msra.mxu0 0.0
    %423 = vmatprep.subr.mxu0 0.0
    %424 = vmatpush1.msra.mxu0 0.0
    %425 = vmatprep.subr.mxu0 0.0
    %426 = vmatpush1.msra.mxu0 0.0
    %427 = vmatprep.subr.mxu0 0.0
    %428 = vmatpush1.msra.mxu0 0.0
    %429 = vmatprep.subr.mxu0 0.0
    %430 = vmatpush1.msra.mxu0 0.0
    %431 = vmatprep.subr.mxu0 0.0
    %432 = vmatpush1.msra.mxu0 0.0
    %433 = vmatprep.subr.mxu0 0.0
    %434 = vmatpush1.msra.mxu0 0.0
    %435 = vmatprep.subr.mxu0 0.0
    %436 = vmatpush1.msra.mxu0 0.0
    %437 = vmatprep.subr.mxu0 0.0
    %438 = vmatpush1.msra.mxu0 0.0
    %439 = vmatprep.mubr.f32.mxu0 0.0
    %440 = vmatmul.mubr.f32.gmra.mrb[0].mxu0 %v289
    %v441 = vpop.f32.mrb[0].mxu0
    %v442 = vadd.f32 0.0, %v441
    %v443 = vpop.f32.mrb[0].mxu0
    %v444 = vadd.f32 0.0, %v443
    %445 = vdwg.mxu0
    %v446 = vld [vmem:[%s2] sm:$0xff]
    %448 = vset.pattern.permute.xlu0 0
    %449 = vperm.xlu0 %448, %v446
    %v450 = vpop.permute.xlu0 %449
    %v452 = vmul.f32 %v371, %v450
    %v453 = vmul.f32 %v373, %v450
    %v454 = vmul.f32 %v442, %v450
    %v455 = vmul.f32 %v444, %v450
    %v456 = vld [vmem:[%s3] sm:$0xff]
    %458 = vset.pattern.permute.xlu0 0
    %459 = vperm.xlu0 %458, %v456
    %v460 = vpop.permute.xlu0 %459
    %v462 = vadd.f32 %v452, %v460
    %v463 = vadd.f32 %v453, %v460
    %v464 = vadd.f32 %v454, %v460
    %v465 = vadd.f32 %v455, %v460
    %v466 = vmul.f32 %v462, 0.3
    %v467 = vmul.f32 %v463, 0.3
    %v468 = vmul.f32 %v464, 0.3
    %v469 = vmul.f32 %v465, 0.3
    %v470 = vmax.f32 %v462, %v466
    %v471 = vmax.f32 %v463, %v467
    %v472 = vmax.f32 %v464, %v468
    %v473 = vmax.f32 %v465, %v469
    %474 = vrot.lane.b32.xlu0 %v470, 112
    %v475 = vpop.permute.xlu0 %474
    %476 = vrot.lane.b32.xlu0 %v471, 112
    %v477 = vpop.permute.xlu0 %476
    %478 = vrot.lane.b32.xlu0 %v472, 112
    %v479 = vpop.permute.xlu0 %478
    %480 = vrot.lane.b32.xlu0 %v473, 112
    %v481 = vpop.permute.xlu0 %480
    %v482 = vsel %vm113, %v479, %v481
    %v483 = vsel %vm113, %v477, %v479
    %v484 = vsel %vm113, %v475, %v477
    %v485 = vsel %vm113, %v481, %v475
    %486 = vrot.lane.b32.xlu0 %v470, 96
    %v487 = vpop.permute.xlu0 %486
    %488 = vrot.lane.b32.xlu0 %v471, 96
    %v489 = vpop.permute.xlu0 %488
    %490 = vrot.lane.b32.xlu0 %v472, 96
    %v491 = vpop.permute.xlu0 %490
    %492 = vrot.lane.b32.xlu0 %v473, 96
    %v493 = vpop.permute.xlu0 %492
    %v494 = vsel %vm130, %v491, %v493
    %v495 = vsel %vm130, %v489, %v491
    %v496 = vsel %vm130, %v487, %v489
    %v497 = vsel %vm130, %v493, %v487
    %498 = vrot.lane.b32.xlu0 %v470, 80
    %v499 = vpop.permute.xlu0 %498
    %500 = vrot.lane.b32.xlu0 %v471, 80
    %v501 = vpop.permute.xlu0 %500
    %502 = vrot.lane.b32.xlu0 %v472, 80
    %v503 = vpop.permute.xlu0 %502
    %504 = vrot.lane.b32.xlu0 %v473, 80
    %v505 = vpop.permute.xlu0 %504
    %v506 = vsel %vm141, %v503, %v505
    %v507 = vsel %vm141, %v501, %v503
    %v508 = vsel %vm141, %v499, %v501
    %v509 = vsel %vm141, %v505, %v499
    %v510 = vmax.f32 %v470, %v484
    %v511 = vmax.f32 %v471, %v483
    %v512 = vmax.f32 %v472, %v482
    %v513 = vmax.f32 %v473, %v485
    %v514 = vmax.f32 %v496, %v508
    %v515 = vmax.f32 %v495, %v507
    %v516 = vmax.f32 %v494, %v506
    %v517 = vmax.f32 %v497, %v509
    %v518 = vmax.f32 %v510, %v514
    %v519 = vmax.f32 %v511, %v515
    %v520 = vmax.f32 %v512, %v516
    %v521 = vmax.f32 %v513, %v517
    %523 = vrot.lane.b32.xlu0 %v518, 64
    %v524 = vpop.permute.xlu0 %523
    %527 = vrot.lane.b32.xlu0 %v519, 64
    %v528 = vpop.permute.xlu0 %527
    %v530 = vcombine.low %v518, %v519
    %v531 = vcombine.high %v518, %v519
    %v533 = vunpack.c.l.s4 1983009808
    %v534 = vunpack.c.0.s8 %v533
    %v535 = vlaneseq
    %v536 = vshrl.u32 %v535, 7
    %v537 = vsub.s32 %v534, %v536
    %v538 = vrot.slane %v530, %v537
    %v540 = vunpack.c.l.s4 1983009808
    %v541 = vunpack.c.0.s8 %v540
    %v542 = vlaneseq
    %v543 = vshrl.u32 %v542, 7
    %v544 = vsub.s32 %v541, %v543
    %v545 = vrot.slane %v531, %v544
    %v546 = vcombine.low %v524, %v528
    %v547 = vcombine.high %v524, %v528
    %v549 = vunpack.c.l.s4 1983009808
    %v550 = vunpack.c.0.s8 %v549
    %v551 = vlaneseq
    %v552 = vshrl.u32 %v551, 7
    %v553 = vsub.s32 %v550, %v552
    %v554 = vrot.slane %v546, %v553
    %v556 = vunpack.c.l.s4 1983009808
    %v557 = vunpack.c.0.s8 %v556
    %v558 = vlaneseq
    %v559 = vshrl.u32 %v558, 7
    %v560 = vsub.s32 %v557, %v559
    %v561 = vrot.slane %v547, %v560
    %v562 = vcombine.low %v538, %v554
    %v563 = vcombine.high %v538, %v554
    %v565 = vunpack.c.l.s4 1934713408
    %v566 = vunpack.c.0.s8 %v565
    %v567 = vlaneseq
    %v568 = vshrl.u32 %v567, 7
    %v569 = vsub.s32 %v566, %v568
    %v570 = vrot.slane %v562, %v569
    %v572 = vunpack.c.l.s4 1934713408
    %v573 = vunpack.c.0.s8 %v572
    %v574 = vlaneseq
    %v575 = vshrl.u32 %v574, 7
    %v576 = vsub.s32 %v573, %v575
    %v577 = vrot.slane %v563, %v576
    %v578 = vcombine.low %v545, %v561
    %v579 = vcombine.high %v545, %v561
    %v581 = vunpack.c.l.s4 1934713408
    %v582 = vunpack.c.0.s8 %v581
    %v583 = vlaneseq
    %v584 = vshrl.u32 %v583, 7
    %v585 = vsub.s32 %v582, %v584
    %v586 = vrot.slane %v578, %v585
    %v588 = vunpack.c.l.s4 1934713408
    %v589 = vunpack.c.0.s8 %v588
    %v590 = vlaneseq
    %v591 = vshrl.u32 %v590, 7
    %v592 = vsub.s32 %v589, %v591
    %v593 = vrot.slane %v579, %v592
    %v594 = vcombine.high %v570, 0.0
    %v595 = vcombine.high %v577, 0.0
    %v596 = vcombine.high %v586, 0.0
    %v597 = vcombine.high %v593, 0.0
    %v598 = vcombine.low %v570, %v577
    %v600 = vunpack.c.l.s4 1983009808
    %v601 = vunpack.c.0.s8 %v600
    %v602 = vlaneseq
    %v603 = vshrl.u32 %v602, 7
    %v604 = vsub.s32 %v601, %v603
    %v605 = vrot.slane %v598, %v604
    %v606 = vcombine.low %v594, %v595
    %v608 = vunpack.c.l.s4 1983009808
    %v609 = vunpack.c.0.s8 %v608
    %v610 = vlaneseq
    %v611 = vshrl.u32 %v610, 7
    %v612 = vsub.s32 %v609, %v611
    %v613 = vrot.slane %v606, %v612
    %v614 = vcombine.low %v586, %v593
    %v616 = vunpack.c.l.s4 1983009808
    %v617 = vunpack.c.0.s8 %v616
    %v618 = vlaneseq
    %v619 = vshrl.u32 %v618, 7
    %v620 = vsub.s32 %v617, %v619
    %v621 = vrot.slane %v614, %v620
    %v622 = vcombine.low %v596, %v597
    %v624 = vunpack.c.l.s4 1983009808
    %v625 = vunpack.c.0.s8 %v624
    %v626 = vlaneseq
    %v627 = vshrl.u32 %v626, 7
    %v628 = vsub.s32 %v625, %v627
    %v629 = vrot.slane %v622, %v628
    %v630 = vcombine.low %v605, %v613
    %v631 = vcombine.high %v605, %v613
    %v633 = vunpack.c.l.s4 1934713408
    %v634 = vunpack.c.0.s8 %v633
    %v635 = vlaneseq
    %v636 = vshrl.u32 %v635, 7
    %v637 = vsub.s32 %v634, %v636
    %v638 = vrot.slane %v630, %v637
    %v640 = vunpack.c.l.s4 1934713408
    %v641 = vunpack.c.0.s8 %v640
    %v642 = vlaneseq
    %v643 = vshrl.u32 %v642, 7
    %v644 = vsub.s32 %v641, %v643
    %v645 = vrot.slane %v631, %v644
    %v646 = vcombine.low %v621, %v629
    %v647 = vcombine.high %v621, %v629
    %v649 = vunpack.c.l.s4 1934713408
    %v650 = vunpack.c.0.s8 %v649
    %v651 = vlaneseq
    %v652 = vshrl.u32 %v651, 7
    %v653 = vsub.s32 %v650, %v652
    %v654 = vrot.slane %v646, %v653
    %v656 = vunpack.c.l.s4 1934713408
    %v657 = vunpack.c.0.s8 %v656
    %v658 = vlaneseq
    %v659 = vshrl.u32 %v658, 7
    %v660 = vsub.s32 %v657, %v659
    %v661 = vrot.slane %v647, %v660
    %v662 = vcombine.low %v638, %v654
    %v663 = vcombine.high %v638, %v654
    %v664 = vcombine.low %v645, %v661
    %v665 = vcombine.high %v645, %v661
    %667 = vrot.lane.b32.xlu0 %v663, 16
    %v668 = vpop.permute.xlu0 %667
    %671 = vrot.lane.b32.xlu0 %v664, 32
    %v672 = vpop.permute.xlu0 %671
    %675 = vrot.lane.b32.xlu0 %v665, 48
    %v676 = vpop.permute.xlu0 %675
    %vm678 = vcmask 130048
    %v679 = vsel %vm678, %v662, %v668
    %vm680 = vcmask 261120
    %v681 = vsel %vm680, %v679, %v672
    %vm682 = vcmask 392192
    %v683 = vsel %vm682, %v681, %v676
    %vm684 = vcmask 523264
    %685 = vst.msk [vmem:[#allocation6] sm:$0xff] %vm684, %v683
    %687 = vrot.lane.b32.xlu0 %v520, 64
    %v688 = vpop.permute.xlu0 %687
    %691 = vrot.lane.b32.xlu0 %v521, 64
    %v692 = vpop.permute.xlu0 %691
    %v694 = vcombine.low %v520, %v521
    %v695 = vcombine.high %v520, %v521
    %v697 = vunpack.c.l.s4 1983009808
    %v698 = vunpack.c.0.s8 %v697
    %v699 = vlaneseq
    %v700 = vshrl.u32 %v699, 7
    %v701 = vsub.s32 %v698, %v700
    %v702 = vrot.slane %v694, %v701
    %v704 = vunpack.c.l.s4 1983009808
    %v705 = vunpack.c.0.s8 %v704
    %v706 = vlaneseq
    %v707 = vshrl.u32 %v706, 7
    %v708 = vsub.s32 %v705, %v707
    %v709 = vrot.slane %v695, %v708
    %v710 = vcombine.low %v688, %v692
    %v711 = vcombine.high %v688, %v692
    %v713 = vunpack.c.l.s4 1983009808
    %v714 = vunpack.c.0.s8 %v713
    %v715 = vlaneseq
    %v716 = vshrl.u32 %v715, 7
    %v717 = vsub.s32 %v714, %v716
    %v718 = vrot.slane %v710, %v717
    %v720 = vunpack.c.l.s4 1983009808
    %v721 = vunpack.c.0.s8 %v720
    %v722 = vlaneseq
    %v723 = vshrl.u32 %v722, 7
    %v724 = vsub.s32 %v721, %v723
    %v725 = vrot.slane %v711, %v724
    %v726 = vcombine.low %v702, %v718
    %v727 = vcombine.high %v702, %v718
    %v729 = vunpack.c.l.s4 1934713408
    %v730 = vunpack.c.0.s8 %v729
    %v731 = vlaneseq
    %v732 = vshrl.u32 %v731, 7
    %v733 = vsub.s32 %v730, %v732
    %v734 = vrot.slane %v726, %v733
    %v736 = vunpack.c.l.s4 1934713408
    %v737 = vunpack.c.0.s8 %v736
    %v738 = vlaneseq
    %v739 = vshrl.u32 %v738, 7
    %v740 = vsub.s32 %v737, %v739
    %v741 = vrot.slane %v727, %v740
    %v742 = vcombine.low %v709, %v725
    %v743 = vcombine.high %v709, %v725
    %v745 = vunpack.c.l.s4 1934713408
    %v746 = vunpack.c.0.s8 %v745
    %v747 = vlaneseq
    %v748 = vshrl.u32 %v747, 7
    %v749 = vsub.s32 %v746, %v748
    %v750 = vrot.slane %v742, %v749
    %v752 = vunpack.c.l.s4 1934713408
    %v753 = vunpack.c.0.s8 %v752
    %v754 = vlaneseq
    %v755 = vshrl.u32 %v754, 7
    %v756 = vsub.s32 %v753, %v755
    %v757 = vrot.slane %v743, %v756
    %v758 = vcombine.high %v734, 0.0
    %v759 = vcombine.high %v741, 0.0
    %v760 = vcombine.high %v750, 0.0
    %v761 = vcombine.high %v757, 0.0
    %v762 = vcombine.low %v734, %v741
    %v764 = vunpack.c.l.s4 1983009808
    %v765 = vunpack.c.0.s8 %v764
    %v766 = vlaneseq
    %v767 = vshrl.u32 %v766, 7
    %v768 = vsub.s32 %v765, %v767
    %v769 = vrot.slane %v762, %v768
    %v770 = vcombine.low %v758, %v759
    %v772 = vunpack.c.l.s4 1983009808
    %v773 = vunpack.c.0.s8 %v772
    %v774 = vlaneseq
    %v775 = vshrl.u32 %v774, 7
    %v776 = vsub.s32 %v773, %v775
    %v777 = vrot.slane %v770, %v776
    %v778 = vcombine.low %v750, %v757
    %v780 = vunpack.c.l.s4 1983009808
    %v781 = vunpack.c.0.s8 %v780
    %v782 = vlaneseq
    %v783 = vshrl.u32 %v782, 7
    %v784 = vsub.s32 %v781, %v783
    %v785 = vrot.slane %v778, %v784
    %v786 = vcombine.low %v760, %v761
    %v788 = vunpack.c.l.s4 1983009808
    %v789 = vunpack.c.0.s8 %v788
    %v790 = vlaneseq
    %v791 = vshrl.u32 %v790, 7
    %v792 = vsub.s32 %v789, %v791
    %v793 = vrot.slane %v786, %v792
    %v794 = vcombine.low %v769, %v777
    %v795 = vcombine.high %v769, %v777
    %v797 = vunpack.c.l.s4 1934713408
    %v798 = vunpack.c.0.s8 %v797
    %v799 = vlaneseq
    %v800 = vshrl.u32 %v799, 7
    %v801 = vsub.s32 %v798, %v800
    %v802 = vrot.slane %v794, %v801
    %v804 = vunpack.c.l.s4 1934713408
    %v805 = vunpack.c.0.s8 %v804
    %v806 = vlaneseq
    %v807 = vshrl.u32 %v806, 7
    %v808 = vsub.s32 %v805, %v807
    %v809 = vrot.slane %v795, %v808
    %v810 = vcombine.low %v785, %v793
    %v811 = vcombine.high %v785, %v793
    %v813 = vunpack.c.l.s4 1934713408
    %v814 = vunpack.c.0.s8 %v813
    %v815 = vlaneseq
    %v816 = vshrl.u32 %v815, 7
    %v817 = vsub.s32 %v814, %v816
    %v818 = vrot.slane %v810, %v817
    %v820 = vunpack.c.l.s4 1934713408
    %v821 = vunpack.c.0.s8 %v820
    %v822 = vlaneseq
    %v823 = vshrl.u32 %v822, 7
    %v824 = vsub.s32 %v821, %v823
    %v825 = vrot.slane %v811, %v824
    %v826 = vcombine.low %v802, %v818
    %v827 = vcombine.high %v802, %v818
    %v828 = vcombine.low %v809, %v825
    %v829 = vcombine.high %v809, %v825
    %831 = vrot.lane.b32.xlu0 %v827, 16
    %v832 = vpop.permute.xlu0 %831
    %835 = vrot.lane.b32.xlu0 %v828, 32
    %v836 = vpop.permute.xlu0 %835
    %839 = vrot.lane.b32.xlu0 %v829, 48
    %v840 = vpop.permute.xlu0 %839
    %v842 = vsel %vm678, %v826, %v832
    %v843 = vsel %vm680, %v842, %v836
    %v844 = vsel %vm682, %v843, %v840
    %845 = vst.msk [vmem:[#allocation6 + $0x8] sm:$0xff] %vm684, %v844
    // Predicated region
    $region22: #{tpu_custom_call.1} parent=1 // pred_check
      _
    $region23: #{tpu_custom_call.1} parent=1 // pred_check_branch
      %847 = sbr.rel (0) target = $region25
    $region24: #{tpu_custom_call.1} parent=1 // pred_region
      %s849 = ssub.s32 256, 256
      %850 = vsyncadd [#allocation5], %s849
      %s851 = sshll.u32 [#allocation6], 4
      %s852 = int_to_ptr.vmem [resolvable:$true] %s851
      %857 = dma.vmem_to_hbm [thread:$0]  %s852, 256, %s4, [#allocation5], 128, 128, 8
    $region25: #{tpu_custom_call.1} parent=1 // pred_fallthru
      _
    // Predicated region
    $region26: #{tpu_custom_call.1} parent=1 // pred_check
      _
    $region27: #{tpu_custom_call.1} parent=1 // pred_check_branch
      %859 = sbr.rel (0) target = $region29
    $region28: #{tpu_custom_call.1} parent=1 // pred_region
      %860 = dma.done [#allocation5], 256
    $region29: #{tpu_custom_call.1} parent=1 // pred_fallthru
      _
    %861 = vsyncpa [#allocation4], 1
    %862 = vsyncpa [#allocation5], 1

</llo_original>
